<compile_context>
chip_gen: v5e
topology: v5e:2x2
jax: 0.10.0
libtpu: 0.0.40
codegen_flags: <defaults>
</compile_context>

<pallas_src>
import functools
import math

import jax
import jax.numpy as jnp
from jax.experimental import pallas as pl
from jax.experimental.pallas import tpu as pltpu


# -----------------------------------------------------------------------------
# Tiling / configuration
# -----------------------------------------------------------------------------

def _round_up(x, m):
    return (x + m - 1) // m * m


def _device_kind():
    try:
        return jax.devices()[0].device_kind.lower()
    except Exception:
        return ""


def _pick_mxu_tile():
    kind = _device_kind()
    if "v6" in kind or "v7" in kind:
        return 256
    return 128


def _pick_vmem_limit():
    kind = _device_kind()
    if "v7" in kind:
        return 32 * 1024 * 1024      # 64 MiB physical on v7x -> keep 32 MiB scoped
    return 64 * 1024 * 1024          # v5e / v6e have 128 MiB physical VMEM


TM = TN = _pick_mxu_tile()          # matmul M/N tiles
TR = 512                            # row tile for elementwise / reduction kernels
_VMEM_LIMIT = _pick_vmem_limit()
_CONV_VMEM_BUDGET = _VMEM_LIMIT // 2

# Exact PyTorch geometry (448x448 input) and the scaled-down test geometry.
CFG_FULL = dict(img=448, patch=16, grid=14, k_tf1=3, s_tf1=17, s_tf2=8, s_tf3=4, s_tf4=2)
CFG_SMALL = dict(img=32, patch=8, grid=2, k_tf1=3, s_tf1=13, s_tf2=4, s_tf3=2, s_tf4=1)


def _check_cfg(c):
    assert 2 * c["patch"] * c["grid"] == c["img"]
    assert (c["grid"] - 1) * c["s_tf1"] + c["k_tf1"] == c["patch"] * c["grid"]
    assert c["s_tf2"] * c["grid"] == c["patch"] * c["grid"] // 2
    assert c["s_tf3"] * c["grid"] == c["patch"] * c["grid"] // 4
    assert c["s_tf4"] * c["grid"] == c["patch"] * c["grid"] // 8


def _block_m(m, pref):
    """Row-tile choice: (block, padded_rows)."""
    if m >= pref:
        if m % pref == 0:
            return pref, m
        return pref, _round_up(m, pref)
    if m % 8 == 0:
        return m, m
    mp = _round_up(m, 8)
    return mp, mp


def _block_n(n, pref):
    """Column-tile choice: (block, padded_cols)."""
    if n < 128:
        return n, n
    if n % pref == 0:
        return pref, n
    if n % 128 == 0:
        return 128, n
    if n <= 1024:
        return n, n
    return 128, _round_up(n, 128)


# -----------------------------------------------------------------------------
# Pallas kernel bodies
# -----------------------------------------------------------------------------

def _mm_kernel(a_ref, b_ref, s_ref, t_ref, o_ref, *, relu, fold):
    acc = jnp.dot(a_ref[...], b_ref[...], preferred_element_type=jnp.float32)
    if fold > 1:
        tm, n = acc.shape
        acc = acc.reshape(tm // fold, n * fold)   # lane-dense store (no masked vst)
    y = acc * s_ref[...] + t_ref[...]
    if relu:
        y = jnp.maximum(y, 0.0)
    o_ref[...] = y.astype(o_ref.dtype)


def _conv_kernel(x_ref, w_ref, s_ref, t_ref, o_ref, *, kh, kw, relu):
    # Direct stride-1 conv.  One sublane-shifted slice + one flatten per kw tap
    # (instead of per kh*kw tap); every (i, j) tap is then a contiguous row
    # window of the flat slab.  Output block is already 2-D -> no final reshape.
    _, _, hin, wp, cin = x_ref.shape
    cout = o_ref.shape[-1]
    tho = hin - kh + 1
    wo = wp - kw + 1
    acc = jnp.zeros((tho * wo, cout), jnp.float32)
    for j in range(kw):
        slab = x_ref[0, 0, :, j:j + wo, :].reshape(hin * wo, cin)
        for i in range(kh):
            acc = acc + jnp.dot(slab[i * wo:i * wo + tho * wo, :],
                                w_ref[i * kw + j],
                                preferred_element_type=jnp.float32)
    y = acc * s_ref[...] + t_ref[...]
    if relu:
        y = jnp.maximum(y, 0.0)
    o_ref[0, 0] = y.astype(o_ref.dtype)


def _affine_kernel(x_ref, s_ref, t_ref, o_ref, *, relu):
    y = x_ref[...].astype(jnp.float32) * s_ref[...] + t_ref[...]
    if relu:
        y = jnp.maximum(y, 0.0)
    o_ref[...] = y.astype(o_ref.dtype)


def _affine_res_kernel(x_ref, s_ref, t_ref, r_ref, o_ref, *, relu):
    y = (x_ref[...].astype(jnp.float32) * s_ref[...] + t_ref[...]
         + r_ref[...].astype(jnp.float32))
    if relu:
        y = jnp.maximum(y, 0.0)
    o_ref[...] = y.astype(o_ref.dtype)


def _colstats_kernel(x_ref, s1_ref, s2_ref):
    # In-kernel accumulator: output block is resident across the whole grid.
    @pl.when(pl.program_id(0) == 0)
    def _():
        s1_ref[...] = jnp.zeros_like(s1_ref)
        s2_ref[...] = jnp.zeros_like(s2_ref)
    x = x_ref[...].astype(jnp.float32)
    s1_ref[...] += jnp.sum(x, axis=0, keepdims=True)
    s2_ref[...] += jnp.sum(x * x, axis=0, keepdims=True)


def _scale_kernel(x_ref, s_ref, o_ref):
    o_ref[...] = (x_ref[...].astype(jnp.float32) * s_ref[...]).astype(o_ref.dtype)


def _attn_kernel(q_ref, k_ref, v_ref, o_ref, *, scale):
    # All heads of one batch element in a single grid step (in-kernel head loop).
    nh = q_ref.shape[1]
    for h in range(nh):
        q = q_ref[0, h]
        k = k_ref[0, h]
        v = v_ref[0, h]
        s = jax.lax.dot_general(q, k, (((1,), (1,)), ((), ())),
                                preferred_element_type=jnp.float32) * scale
        s = s - jnp.max(s, axis=-1, keepdims=True)
        p = jnp.exp(s)
        p = p * pl.reciprocal(jnp.sum(p, axis=-1, keepdims=True), approx=False)
        o = jnp.dot(p.astype(v.dtype), v, preferred_element_type=jnp.float32)
        o_ref[0, h] = o.astype(o_ref.dtype)


# -----------------------------------------------------------------------------
# Pallas wrappers
# -----------------------------------------------------------------------------

@functools.partial(jax.jit, static_argnames=("relu", "out_dtype"))
def fused_matmul(a, b, scale, shift, relu=False, out_dtype=jnp.bfloat16):
    """(M,K)@(K,N) in bf16 with f32 accumulation and a fused per-column
    scale/shift (+ReLU) epilogue.  Full-K blocks.  K is zero-padded to a
    multiple of 128 only when sublane-unaligned; when N < 128 divides 128 the
    output rows are folded into the lane dim so HBM stores are lane-dense."""
    M, K = a.shape
    _, N = b.shape
    TMb, Mp = _block_m(M, TM)
    TNb, Np = _block_n(N, TN)
    fold = 1
    if N < 128 and 128 % N == 0 and TMb % (128 // N) == 0:
        fold = 128 // N
    Kp = K if K % 8 == 0 else _round_up(K, 128)
    a = a.astype(jnp.bfloat16)
    b = b.astype(jnp.bfloat16)
    scale = scale.astype(jnp.float32)
    shift = shift.astype(jnp.float32)
    if Mp != M or Kp != K:
        a = jnp.pad(a, ((0, Mp - M), (0, Kp - K)))
    if Np != N or Kp != K:
        b = jnp.pad(b, ((0, Kp - K), (0, Np - N)))
    if Np != N:
        scale = jnp.pad(scale, (0, Np - N))
        shift = jnp.pad(shift, (0, Np - N))
    if fold > 1:
        scale = jnp.tile(scale, fold)
        shift = jnp.tile(shift, fold)
    nw = scale.shape[0]
    scale = scale.reshape(1, nw)
    shift = shift.reshape(1, nw)
    if fold > 1:
        out_shape = (Mp // fold, N * fold)
        out_block = (TMb // fold, N * fold)
        vec_block = (1, N * fold)
    else:
        out_shape = (Mp, Np)
        out_block = (TMb, TNb)
        vec_block = (1, TNb)
    out = pl.pallas_call(
        functools.partial(_mm_kernel, relu=relu, fold=fold),
        out_shape=jax.ShapeDtypeStruct(out_shape, out_dtype),
        grid=(Mp // TMb, Np // TNb),
        in_specs=[
            pl.BlockSpec((TMb, Kp), lambda i, j: (i, 0)),
            pl.BlockSpec((Kp, TNb), lambda i, j: (0, j)),
            pl.BlockSpec(vec_block, lambda i, j: (0, j)),
            pl.BlockSpec(vec_block, lambda i, j: (0, j)),
        ],
        out_specs=pl.BlockSpec(out_block, lambda i, j: (i, j)),
        compiler_params=pltpu.CompilerParams(
            dimension_semantics=("parallel", "parallel"),
            vmem_limit_bytes=_VMEM_LIMIT),
    )(a, b, scale, shift)
    if fold > 1:
        out = out.reshape(Mp, N)          # free row-major reinterpretation
    if Mp != M or Np != N:
        out = out[:M, :N]
    return out


def _conv_row_tiles(Ho, Wo, Wp, Cin, Cout, kh, kw, budget=_CONV_VMEM_BUDGET):
    """Row tiles per image such that double-buffered input/output blocks, the
    weight double-buffer, the f32 accumulator and in-kernel slab temps fit."""
    w_bytes = kh * kw * Cin * Cout * 2 * 2 + 4 * Cout * 4
    for T in range(1, Ho + 1):
        if Ho % T:
            continue
        tho = Ho // T
        hin = tho + kh - 1
        vmem = (hin * Wp * Cin * 2 * 2          # input block (bf16, double-buffered)
                + tho * Wo * Cout * 2 * 2       # output block (bf16, double-buffered)
                + tho * Wo * Cout * 4           # f32 accumulator
                + hin * Wo * Cin * 2            # in-kernel slab relayout temp
                + w_bytes)
        if vmem <= budget:
            return T
    return Ho


@functools.partial(jax.jit, static_argnames=("kh", "kw", "relu"))
def _conv_pallas(xc, wt, scale, shift, *, kh, kw, relu):
    B, T, Hin, Wp, Cin = xc.shape
    Cout = wt.shape[-1]
    THo = Hin - kh + 1
    Wo = Wp - kw + 1
    return pl.pallas_call(
        functools.partial(_conv_kernel, kh=kh, kw=kw, relu=relu),
        out_shape=jax.ShapeDtypeStruct((B, T, THo * Wo, Cout), jnp.bfloat16),
        grid=(B, T),
        in_specs=[
            pl.BlockSpec((1, 1, Hin, Wp, Cin), lambda b, t: (b, t, 0, 0, 0)),
            pl.BlockSpec((kh * kw, Cin, Cout), lambda b, t: (0, 0, 0)),
            pl.BlockSpec((1, Cout), lambda b, t: (0, 0)),
            pl.BlockSpec((1, Cout), lambda b, t: (0, 0)),
        ],
        out_specs=pl.BlockSpec((1, 1, THo * Wo, Cout), lambda b, t: (b, t, 0, 0)),
        compiler_params=pltpu.CompilerParams(
            dimension_semantics=("parallel", "parallel"),
            vmem_limit_bytes=_VMEM_LIMIT),
    )(xc, wt, scale, shift)


@functools.partial(jax.jit, static_argnames=("relu",))
def pallas_affine(x2d, scale, shift, residual=None, relu=False):
    """y = x*scale + shift (+residual) (+ReLU), per channel.  When C < 128 the
    rows are folded so stores are lane-dense (e.g. (M,32)->(M/4,128))."""
    M, C = x2d.shape
    rep = 1
    if C < 128 and 128 % C == 0:
        rep = 128 // C
        while rep > 1 and M % rep != 0:
            rep //= 2
    Cr, Mr = C * rep, M // rep
    x = x2d.reshape(Mr, Cr)
    s = jnp.tile(scale.astype(jnp.float32), rep).reshape(1, Cr)
    t = jnp.tile(shift.astype(jnp.float32), rep).reshape(1, Cr)
    res = residual.reshape(Mr, Cr) if residual is not None else None
    TRb, Mp = _block_m(Mr, TR)
    if Mp != Mr:
        x = jnp.pad(x, ((0, Mp - Mr), (0, 0)))
        if res is not None:
            res = jnp.pad(res, ((0, Mp - Mr), (0, 0)))
    row_spec = pl.BlockSpec((TRb, Cr), lambda i: (i, 0))
    vec_spec = pl.BlockSpec((1, Cr), lambda i: (0, 0))
    if res is None:
        kern = functools.partial(_affine_kernel, relu=relu)
        operands, specs = (x, s, t), [row_spec, vec_spec, vec_spec]
    else:
        kern = functools.partial(_affine_res_kernel, relu=relu)
        operands, specs = (x, s, t, res), [row_spec, vec_spec, vec_spec, row_spec]
    out = pl.pallas_call(
        kern,
        out_shape=jax.ShapeDtypeStruct((Mp, Cr), x2d.dtype),
        grid=(Mp // TRb,),
        in_specs=specs,
        out_specs=row_spec,
        compiler_params=pltpu.CompilerParams(
            dimension_semantics=("parallel",), vmem_limit_bytes=_VMEM_LIMIT),
    )(*operands)
    if Mp != Mr:
        out = out[:Mr]
    return out.reshape(M, C)


@jax.jit
def pallas_colstats(x2d):
    """Single-pass per-column sum and sum-of-squares (BatchNorm statistics)."""
    M, C = x2d.shape
    TRb, Mp = _block_m(M, TR)
    x = x2d if Mp == M else jnp.pad(x2d, ((0, Mp - M), (0, 0)))
    T = Mp // TRb
    s1, s2 = pl.pallas_call(
        _colstats_kernel,
        out_shape=(jax.ShapeDtypeStruct((1, C), jnp.float32),
                   jax.ShapeDtypeStruct((1, C), jnp.float32)),
        grid=(T,),
        in_specs=[pl.BlockSpec((TRb, C), lambda i: (i, 0))],
        out_specs=(pl.BlockSpec((1, C), lambda i: (0, 0)),
                   pl.BlockSpec((1, C), lambda i: (0, 0))),
        compiler_params=pltpu.CompilerParams(
            dimension_semantics=("arbitrary",), vmem_limit_bytes=_VMEM_LIMIT),
    )(x)
    return s1[0], s2[0]


@jax.jit
def pallas_se_scale(x, s):
    """SE channel re-scale, batched over the batch dimension in the grid."""
    B, H, W, C = x.shape
    HW = H * W
    x2 = x.reshape(B, HW, C)
    TRb, HWp = _block_m(HW, TR)
    if HWp != HW:
        x2 = jnp.pad(x2, ((0, 0), (0, HWp - HW), (0, 0)))
    s3 = s.astype(jnp.float32).reshape(B, 1, C)
    out = pl.pallas_call(
        _scale_kernel,
        out_shape=jax.ShapeDtypeStruct((B, HWp, C), x.dtype),
        grid=(B, HWp // TRb),
        in_specs=[pl.BlockSpec((1, TRb, C), lambda b, i: (b, i, 0)),
                  pl.BlockSpec((1, 1, C), lambda b, i: (b, 0, 0))],
        out_specs=pl.BlockSpec((1, TRb, C), lambda b, i: (b, i, 0)),
        compiler_params=pltpu.CompilerParams(
            dimension_semantics=("parallel", "parallel"),
            vmem_limit_bytes=_VMEM_LIMIT),
    )(x2, s3)
    if HWp != HW:
        out = out[:, :HW]
    return out.reshape(B, H, W, C)


@functools.partial(jax.jit, static_argnames=("scale",))
def pallas_attention(q, k, v, scale):
    """Full attention (scale + softmax + PV), one grid step per batch element
    (all heads merged to cut per-step overhead; even grid for megacore)."""
    B, H, N, D = q.shape
    spec = pl.BlockSpec((1, H, N, D), lambda b: (b, 0, 0, 0))
    return pl.pallas_call(
        functools.partial(_attn_kernel, scale=scale),
        out_shape=jax.ShapeDtypeStruct((B, H, N, D), q.dtype),
        grid=(B,),
        in_specs=[spec, spec, spec],
        out_specs=spec,
        compiler_params=pltpu.CompilerParams(
            dimension_semantics=("parallel",), vmem_limit_bytes=_VMEM_LIMIT),
    )(q, k, v)


# -----------------------------------------------------------------------------
# Layer helpers
# -----------------------------------------------------------------------------

def _conv_direct(x, w, scale, shift, pad, relu):
    """Stride-1 KxK conv without any materialized im2col."""
    B, H, W, Cin = x.shape
    Cout, _, kh, kw = w.shape
    Ho, Wo = H + 2 * pad - kh + 1, W + 2 * pad - kw + 1
    xp = x if pad == 0 else jnp.pad(x, ((0, 0), (pad, pad), (pad, pad), (0, 0)))
    xp = xp.astype(jnp.bfloat16)
    Wp = xp.shape[2]
    T = _conv_row_tiles(Ho, Wo, Wp, Cin, Cout, kh, kw)
    THo = Ho // T
    Hin = THo + kh - 1
    if T == 1:
        xc = xp[:, None]
    else:  # overlapping row chunks (halo of kh-1 rows); rare with the new budget.
        xc = jnp.stack([xp[:, t * THo:t * THo + Hin] for t in range(T)], axis=1)
    wt = jnp.transpose(w, (2, 3, 1, 0)).reshape(kh * kw, Cin, Cout).astype(jnp.bfloat16)
    y = _conv_pallas(xc, wt, scale.reshape(1, Cout), shift.reshape(1, Cout),
                     kh=kh, kw=kw, relu=relu)
    return y.reshape(B, Ho, Wo, Cout)


def conv2d(x, w, bias=None, stride=1, pad=0, relu=False):
    """x: (B,H,W,Cin) NHWC;  w: (Cout,Cin,kh,kw) PyTorch layout."""
    Cout, Cin, kh, kw = w.shape
    B, H, W, _ = x.shape
    scale = jnp.ones((Cout,), jnp.float32)
    shift = (bias.astype(jnp.float32) if bias is not None
             else jnp.zeros((Cout,), jnp.float32))

    if kh == 1 and kw == 1 and pad == 0:
        if stride > 1:
            x = x[:, ::stride, ::stride, :]
            B, H, W, _ = x.shape
        wm = jnp.transpose(w.reshape(Cout, Cin), (1, 0))
        y = fused_matmul(x.reshape(B * H * W, Cin), wm, scale, shift, relu=relu)
        return y.reshape(B, H, W, Cout)

    if kh == kw == stride and pad == 0:
        # k == stride: disjoint windows -> plain patchify reshape (no expansion).
        Ho, Wo = H // kh, W // kw
        xp = x.reshape(B, Ho, kh, Wo, kw, Cin)
        xp = jnp.transpose(xp, (0, 1, 3, 2, 4, 5)).reshape(B * Ho * Wo, kh * kw * Cin)
        wm = jnp.transpose(w, (2, 3, 1, 0)).reshape(kh * kw * Cin, Cout)
        y = fused_matmul(xp, wm, scale, shift, relu=relu)
        return y.reshape(B, Ho, Wo, Cout)

    if stride == 1:
        return _conv_direct(x, w, scale, shift, pad, relu)

    # Strided k>1 convs (firstconv 7x7/2 + the three 3x3/2 downsampling convs):
    # compact im2col (output is stride^2 smaller so the patch tensor stays small).
    # TODO(synk): could be replaced by a phase-decomposed direct Pallas kernel.
    Ho = (H + 2 * pad - kh) // stride + 1
    Wo = (W + 2 * pad - kw) // stride + 1
    xp = jnp.pad(x, ((0, 0), (pad, pad), (pad, pad), (0, 0)))
    cols = []
    for i in range(kh):
        for j in range(kw):
            cols.append(xp[:, i:i + (Ho - 1) * stride + 1:stride,
                           j:j + (Wo - 1) * stride + 1:stride, :])
    patches = jnp.concatenate(cols, axis=-1).reshape(B * Ho * Wo, kh * kw * Cin)
    wm = jnp.transpose(w, (2, 3, 1, 0)).reshape(kh * kw * Cin, Cout)
    y = fused_matmul(patches, wm, scale, shift, relu=relu)
    return y.reshape(B, Ho, Wo, Cout)


def conv_transpose2d(x, w, bias=None, stride=1, pad=0, out_pad=0):
    """x: NHWC;  w: (Cin,Cout,kh,kw) PyTorch ConvTranspose2d layout."""
    B, H, W, Cin = x.shape
    _, Cout, kh, kw = w.shape
    Ho = (H - 1) * stride - 2 * pad + kh + out_pad
    Wo = (W - 1) * stride - 2 * pad + kw + out_pad
    nkk = kh * kw * Cout
    wm = jnp.transpose(w, (0, 2, 3, 1)).reshape(Cin, nkk)
    ones = jnp.ones((nkk,), jnp.float32)

    if pad == 0 and out_pad == 0 and stride >= kh and stride >= kw:
        # Disjoint taps (all the tf deconvs): one matmul producing every tap,
        # then zero-pad of the tap dims to (s, s) + transpose + reshape in bf16
        # (no strided scatter-adds, no f32 intermediate).
        fuse_bias = bias is not None and stride == kh and stride == kw
        shift = (jnp.tile(bias.astype(jnp.float32), kh * kw) if fuse_bias
                 else jnp.zeros((nkk,), jnp.float32))
        y = fused_matmul(x.reshape(B * H * W, Cin), wm, ones, shift)
        y = y.reshape(B, H, W, kh, kw, Cout)
        y = jnp.transpose(y, (0, 1, 3, 2, 4, 5))          # (B, H, kh, W, kw, C)
        s = stride
        if s > kh or s > kw:
            y = jnp.pad(y, ((0, 0), (0, 0), (0, s - kh),
                            (0, 0), (0, s - kw), (0, 0)))
        out = y.reshape(B, H * s, W * s, Cout)[:, :Ho, :Wo, :]
        if bias is not None and not fuse_bias:
            # stride > k leaves bias-only gaps between taps -> add bias after.
            out = out + bias.astype(out.dtype)
        return out

    # Overlapping taps (decoder up-convs, final_conv1): matmul for all taps,
    # then k*k strided scatter-adds (cheap at these sizes).
    y = fused_matmul(x.reshape(B * H * W, Cin), wm, ones,
                     jnp.zeros((nkk,), jnp.float32))
    y = y.reshape(B, H, W, kh, kw, Cout).astype(jnp.float32)
    out = jnp.zeros((B, Ho, Wo, Cout), jnp.float32)
    for i in range(kh):
        h_lo = max(0, -((i - pad) // stride))
        h_hi = min(H - 1, (Ho - 1 + pad - i) // stride)
        if h_hi < h_lo:
            continue
        p_lo = h_lo * stride + i - pad
        nh = h_hi - h_lo + 1
        for j in range(kw):
            w_lo = max(0, -((j - pad) // stride))
            w_hi = min(W - 1, (Wo - 1 + pad - j) // stride)
            if w_hi < w_lo:
                continue
            q_lo = w_lo * stride + j - pad
            nw = w_hi - w_lo + 1
            out = out.at[:, p_lo:p_lo + (nh - 1) * stride + 1:stride,
                         q_lo:q_lo + (nw - 1) * stride + 1:stride, :].add(
                y[:, h_lo:h_lo + nh, w_lo:w_lo + nw, i, j, :])
    if bias is not None:
        out = out + bias.astype(jnp.float32)
    return out.astype(jnp.bfloat16)


def batchnorm(x, p, relu, residual=None, eps=1e-5):
    """BatchNorm2d in training mode (batch statistics): Pallas stats pass +
    one fused Pallas affine (+residual)(+ReLU) pass."""
    # TODO(synk): BN stats could be emitted from the producing conv epilogue to
    # drop one HBM read pass per BN.
    B, H, W, C = x.shape
    x2 = x.reshape(B * H * W, C)
    n = B * H * W
    s1, s2 = pallas_colstats(x2)
    mean = s1 / n
    var = jnp.maximum(s2 / n - mean * mean, 0.0)   # clamp: bf16 cancellation guard
    scale = p["g"] / jnp.sqrt(var + eps)
    shift = p["b"] - mean * scale
    res2 = residual.reshape(B * H * W, C) if residual is not None else None
    y = pallas_affine(x2, scale, shift, residual=res2, relu=relu)
    return y.reshape(B, H, W, C)


def se_block(x, p):
    B, H, W, C = x.shape
    y = jnp.mean(x.astype(jnp.float32), axis=(1, 2))   # tiny (B,C) pool in XLA
    r = p["fc1"]["w"].shape[0]
    h = fused_matmul(y, jnp.transpose(p["fc1"]["w"]),
                     jnp.ones((r,), jnp.float32), jnp.zeros((r,), jnp.float32),
                     relu=True)
    s = fused_matmul(h, jnp.transpose(p["fc2"]["w"]),
                     jnp.ones((C,), jnp.float32), jnp.zeros((C,), jnp.float32))
    s = jax.nn.sigmoid(s.astype(jnp.float32))
    return pallas_se_scale(x, s)


# --- transformer (DeiT-tiny style block, random weights) ---------------------

def layer_norm(x, g, b, eps=1e-6):
    x = x.astype(jnp.float32)
    m = jnp.mean(x, axis=-1, keepdims=True)
    v = jnp.var(x, axis=-1, keepdims=True)
    return (x - m) / jnp.sqrt(v + eps) * g + b


def linear(x2d, p, relu=False):
    Cout = p["w"].shape[0]
    shift = p["b"] if p["b"] is not None else jnp.zeros((Cout,), jnp.float32)
    return fused_matmul(x2d, jnp.transpose(p["w"]),
                        jnp.ones((Cout,), jnp.float32), shift, relu=relu)


def attention(x, p, num_heads=3):
    B, N, D = x.shape
    hd = D // num_heads
    qkv = linear(x.reshape(B * N, D), p["qkv"]).reshape(B, N, 3, num_heads, hd)
    qkv = jnp.transpose(qkv, (2, 0, 3, 1, 4))            # (3, B, heads, N, hd)
    q, k, v = qkv[0], qkv[1], qkv[2]
    o = pallas_attention(q, k, v, scale=float(hd) ** -0.5)
    o = jnp.transpose(o, (0, 2, 1, 3)).reshape(B * N, D)
    return linear(o, p["proj"]).reshape(B, N, D)


def mlp(x, p):
    B, N, D = x.shape
    h = linear(x.reshape(B * N, D), p["fc1"])
    h = jax.nn.gelu(h.astype(jnp.float32), approximate=False)
    return linear(h, p["fc2"]).reshape(B, N, D)


def transformer_block(x, p):
    x = x + attention(layer_norm(x, p["ln1_g"], p["ln1_b"]), p)
    x = x + mlp(layer_norm(x, p["ln2_g"], p["ln2_b"]), p)
    return x


def patch_embed(x, p, cfg):
    y = conv2d(x, p["w"], p["b"], stride=cfg["patch"], pad=0)
    B, Hh, Ww, C = y.shape
    return y.reshape(B, Hh * Ww, C)


# --- ResNet-34 pieces ---------------------------------------------------------

def basic_block(x, p):
    identity = x
    out = conv2d(x, p["conv1"]["w"], None, stride=p["stride"], pad=1)
    out = batchnorm(out, p["bn1"], relu=True)
    out = conv2d(out, p["conv2"]["w"], None, stride=1, pad=1)
    if p["down"] is not None:
        identity = conv2d(x, p["down"]["conv"]["w"], None, stride=p["stride"], pad=0)
        identity = batchnorm(identity, p["down"]["bn"], relu=False)
    # BN + residual add + ReLU fused into a single Pallas pass.
    return batchnorm(out, p["bn2"], relu=True, residual=identity)


def resnet_layer(x, blocks):
    for bp in blocks:
        x = basic_block(x, bp)
    return x


def decoder_bottleneck(x, p):
    x = conv2d(x, p["conv1"]["w"], p["conv1"]["b"], 1, 0)
    x = batchnorm(x, p["bn1"], relu=True)
    x = conv_transpose2d(x, p["up"]["w"], p["up"]["b"], stride=2, pad=1, out_pad=1)
    x = batchnorm(x, p["up_bn"], relu=True)
    x = conv2d(x, p["conv3"]["w"], p["conv3"]["b"], 1, 0)
    x = batchnorm(x, p["bn3"], relu=True)
    return x


# -----------------------------------------------------------------------------
# Deterministic parameter initialization (synthetic; no checkpoint loading)
# -----------------------------------------------------------------------------

class Init:
    def __init__(self, seed):
        self._keys = iter(jax.random.split(jax.random.PRNGKey(seed), 1024))

    def key(self):
        return next(self._keys)

    def conv(self, cin, cout, k, bias=True):
        w = jax.random.normal(self.key(), (cout, cin, k, k), jnp.float32)
        w = (w * float(1.0 / math.sqrt(cin * k * k))).astype(jnp.bfloat16)
        return {"w": w, "b": jnp.zeros((cout,), jnp.float32) if bias else None}

    def convT(self, cin, cout, k, bias=True):
        w = jax.random.normal(self.key(), (cin, cout, k, k), jnp.float32)
        w = (w * float(1.0 / math.sqrt(cin * k * k))).astype(jnp.bfloat16)
        return {"w": w, "b": jnp.zeros((cout,), jnp.float32) if bias else None}

    def linear(self, cin, cout, bias=True):
        w = jax.random.normal(self.key(), (cout, cin), jnp.float32)
        w = (w * float(1.0 / math.sqrt(cin))).astype(jnp.bfloat16)
        return {"w": w, "b": jnp.zeros((cout,), jnp.float32) if bias else None}

    def bn(self, c):
        return {"g": jnp.ones((c,), jnp.float32), "b": jnp.zeros((c,), jnp.float32)}

    def basic_block(self, cin, cout, stride):
        down = None
        if stride != 1 or cin != cout:
            down = {"conv": self.conv(cin, cout, 1, bias=False), "bn": self.bn(cout)}
        return {"conv1": self.conv(cin, cout, 3, bias=False), "bn1": self.bn(cout),
                "conv2": self.conv(cout, cout, 3, bias=False), "bn2": self.bn(cout),
                "down": down, "stride": stride}

    def res_layer(self, cin, cout, n, stride):
        blocks = [self.basic_block(cin, cout, stride)]
        blocks += [self.basic_block(cout, cout, 1) for _ in range(n - 1)]
        return blocks

    def tf_block(self, dim=192, mlp_ratio=4):
        return {"ln1_g": jnp.ones((dim,), jnp.float32), "ln1_b": jnp.zeros((dim,), jnp.float32),
                "qkv": self.linear(dim, dim * 3), "proj": self.linear(dim, dim),
                "ln2_g": jnp.ones((dim,), jnp.float32), "ln2_b": jnp.zeros((dim,), jnp.float32),
                "fc1": self.linear(dim, dim * mlp_ratio),
                "fc2": self.linear(dim * mlp_ratio, dim)}

    def decoder(self, cin, nf):
        mid = cin // 4
        return {"conv1": self.conv(cin, mid, 1), "bn1": self.bn(mid),
                "up": self.convT(mid, mid, 3), "up_bn": self.bn(mid),
                "conv3": self.conv(mid, nf, 1), "bn3": self.bn(nf)}

    def se(self, c, r=16):
        return {"fc1": self.linear(c, c // r, bias=False),
                "fc2": self.linear(c // r, c, bias=False)}


def build_params(cfg, n_classes=1):
    I = Init(1)
    p = {}
    # ResNet-34 encoder (no maxpool, matching the reference forward)
    p["firstconv"] = I.conv(3, 64, 7, bias=False)
    p["firstbn"] = I.bn(64)
    p["layer1"] = I.res_layer(64, 64, 3, 1)
    p["layer2"] = I.res_layer(64, 128, 4, 2)
    p["layer3"] = I.res_layer(128, 256, 6, 2)
    p["layer4"] = I.res_layer(256, 512, 3, 2)
    # DeiT-tiny style patch embed + first two blocks (random weights).
    p["patch_embed"] = I.conv(3, 192, cfg["patch"])
    p["tf_blocks"] = [I.tf_block() for _ in range(2)]
    # fusion / SE / 1x1 projections
    p["conv_seq_img"] = I.conv(192, 64, 1)
    p["se"] = I.se(128)
    p["conv2d"] = I.conv(128, 64, 1)
    p["decoder4"] = I.decoder(512, 256)
    p["decoder3"] = I.decoder(256, 128)
    p["decoder2"] = I.decoder(128, 64)
    # decoder1 is constructed in the PyTorch module but never used in forward.
    p["final_conv1"] = I.convT(64, 32, 4)
    p["final_conv2"] = I.conv(32, 32, 3)
    p["final_conv3"] = I.conv(32, n_classes, 3)
    p["conv"] = I.conv(3, 3, 2)
    p["tf_conv1"] = I.convT(192, 192, cfg["k_tf1"])
    p["in_tf2conv"] = I.convT(192, 3, cfg["k_tf1"])
    p["tf2_conv"] = I.convT(192, 128, cfg["s_tf2"])
    p["se2"] = I.se(256)
    p["conv2d2"] = I.conv(256, 128, 1)
    p["tf3_conv"] = I.convT(192, 256, cfg["s_tf3"])
    p["se3"] = I.se(512)
    p["conv2d3"] = I.conv(512, 256, 1)
    p["tf4_conv"] = I.convT(192, 512, cfg["s_tf4"])
    p["se4"] = I.se(1024)
    p["conv2d4"] = I.conv(1024, 512, 1)
    return p


# -----------------------------------------------------------------------------
# CCT_Net forward
# -----------------------------------------------------------------------------

def cct_forward(p, x_nchw, cfg):
    _check_cfg(cfg)
    G = cfg["grid"]
    x = jnp.transpose(x_nchw, (0, 2, 3, 1)).astype(jnp.bfloat16)     # NCHW -> NHWC
    B = x.shape[0]

    x1 = conv2d(x, p["conv"]["w"], p["conv"]["b"], stride=2, pad=0)

    # CNN encoder
    f_c0 = conv2d(x, p["firstconv"]["w"], None, stride=2, pad=3)
    f_c0 = batchnorm(f_c0, p["firstbn"], relu=True)
    f_c1 = resnet_layer(f_c0, p["layer1"])
    f_c2 = resnet_layer(f_c1, p["layer2"])
    f_c3 = resnet_layer(f_c2, p["layer3"])
    feature_cnn = resnet_layer(f_c3, p["layer4"])

    # TODO(synk): reference forward reads `emb` before any assignment (NameError
    # in PyTorch); we assume the intended `emb = self.patch_embed(x1)`.
    emb = patch_embed(x1, p["patch_embed"], cfg)
    for blk in p["tf_blocks"]:
        emb = transformer_block(emb, blk)
    f_tf1 = emb.reshape(B, G, G, 192)   # == permute(0,2,1).view(b,192,G,G) in NHWC
    in_tf2 = conv_transpose2d(f_tf1, p["in_tf2conv"]["w"], p["in_tf2conv"]["b"],
                              stride=cfg["s_tf1"])
    f_tf1 = conv_transpose2d(f_tf1, p["tf_conv1"]["w"], p["tf_conv1"]["b"],
                             stride=cfg["s_tf1"])
    f_tf1 = conv2d(f_tf1, p["conv_seq_img"]["w"], p["conv_seq_img"]["b"], 1, 0)
    feature_cat1 = jnp.concatenate([f_c0, f_tf1], axis=-1)
    feature_att1 = se_block(feature_cat1, p["se"])
    feature_out1 = conv2d(feature_att1, p["conv2d"]["w"], p["conv2d"]["b"], 1, 0)

    emb = patch_embed(in_tf2, p["patch_embed"], cfg)
    for blk in p["tf_blocks"]:
        emb = transformer_block(emb, blk)
    f_tf2 = emb.reshape(B, G, G, 192)
    in_tf3 = conv_transpose2d(f_tf2, p["in_tf2conv"]["w"], p["in_tf2conv"]["b"],
                              stride=cfg["s_tf1"])
    f_tf2 = conv_transpose2d(f_tf2, p["tf2_conv"]["w"], p["tf2_conv"]["b"],
                             stride=cfg["s_tf2"])
    feature_cat2 = jnp.concatenate([f_c2, f_tf2], axis=-1)
    feature_att2 = se_block(feature_cat2, p["se2"])
    feature_out2 = conv2d(feature_att2, p["conv2d2"]["w"], p["conv2d2"]["b"], 1, 0)

    emb = patch_embed(in_tf3, p["patch_embed"], cfg)
    for blk in p["tf_blocks"]:
        emb = transformer_block(emb, blk)
    f_tf3 = emb.reshape(B, G, G, 192)
    in_tf4 = conv_transpose2d(f_tf3, p["in_tf2conv"]["w"], p["in_tf2conv"]["b"],
                              stride=cfg["s_tf1"])
    f_tf3 = conv_transpose2d(f_tf3, p["tf3_conv"]["w"], p["tf3_conv"]["b"],
                             stride=cfg["s_tf3"])
    feature_cat3 = jnp.concatenate([f_c3, f_tf3], axis=-1)
    feature_att3 = se_block(feature_cat3, p["se3"])
    feature_out3 = conv2d(feature_att3, p["conv2d3"]["w"], p["conv2d3"]["b"], 1, 0)

    emb = patch_embed(in_tf4, p["patch_embed"], cfg)
    for blk in p["tf_blocks"]:
        emb = transformer_block(emb, blk)
    f_tf4 = emb.reshape(B, G, G, 192)
    fu_ftf4 = conv_transpose2d(f_tf4, p["tf4_conv"]["w"], p["tf4_conv"]["b"],
                               stride=cfg["s_tf4"])
    f_tf4 = conv2d(f_tf4, p["conv_seq_img"]["w"], p["conv_seq_img"]["b"], 1, 0)
    print("f_tf43_size:", (B, f_tf4.shape[3], f_tf4.shape[1], f_tf4.shape[2]))  # NCHW

    feature_cat = jnp.concatenate([feature_cnn, fu_ftf4], axis=-1)
    feature_att4 = se_block(feature_cat, p["se4"])
    feature_out4 = conv2d(feature_att4, p["conv2d4"]["w"], p["conv2d4"]["b"], 1, 0)

    d4 = decoder_bottleneck(feature_out4, p["decoder4"]) + feature_out3
    d3 = decoder_bottleneck(d4, p["decoder3"]) + feature_out2
    d2 = decoder_bottleneck(d3, p["decoder2"]) + feature_out1

    out1 = conv_transpose2d(d2, p["final_conv1"]["w"], None, stride=2, pad=1)
    Bf, Hf, Wf, Cf = out1.shape
    out1 = pallas_affine(out1.reshape(-1, Cf), jnp.ones((Cf,), jnp.float32),
                         p["final_conv1"]["b"], relu=True).reshape(Bf, Hf, Wf, Cf)
    out = conv2d(out1, p["final_conv2"]["w"], p["final_conv2"]["b"], 1, 1, relu=True)
    out = conv2d(out, p["final_conv3"]["w"], p["final_conv3"]["b"], 1, 1)
    return jnp.transpose(out.astype(jnp.float32), (0, 3, 1, 2))          # NHWC -> NCHW


if __name__ == "__main__":
    cfg = CFG_SMALL   # proportionally scaled geometry (CFG_FULL = exact 448x448 reference)
    B = 2
    x = jax.random.normal(jax.random.PRNGKey(0), (B, 3, cfg["img"], cfg["img"]), jnp.float32)
    params = build_params(cfg, n_classes=1)
    out = cct_forward(params, x, cfg)
    out = jax.block_until_ready(out)
    assert out.shape == (B, 1, cfg["img"], cfg["img"]), out.shape
    assert bool(jnp.all(jnp.isfinite(out)))
    print("KERNEL_OK")
</pallas_src>

<mosaic_0001>
module attributes {stable_mosaic.version = 11 : i64} {
  func.func @_mm_kernel(%arg0: i32, %arg1: i32, %arg2: memref<128x128xbf16, #tpu.memory_space<vmem>>, %arg3: memref<128x3xbf16, #tpu.memory_space<vmem>>, %arg4: memref<1x3xf32, #tpu.memory_space<vmem>>, %arg5: memref<1x3xf32, #tpu.memory_space<vmem>>, %arg6: memref<128x3xbf16, #tpu.memory_space<vmem>>) attributes {dimension_semantics = [#tpu.dimension_semantics<parallel>, #tpu.dimension_semantics<parallel>], iteration_bounds = array<i64: 4, 1>, scalar_prefetch = 0 : i64, scratch_operands = 0 : i64, tpu.core_type = #tpu.core_type<tc>, window_params = [{transform_indices = @transform_0, window_bounds = array<i64: 128, 128>}, {transform_indices = @transform_1, window_bounds = array<i64: 128, 3>}, {transform_indices = @transform_2, window_bounds = array<i64: 1, 3>}, {transform_indices = @transform_3, window_bounds = array<i64: 1, 3>}, {transform_indices = @transform_4, window_bounds = array<i64: 128, 3>}]} {
    %c0 = arith.constant 0 : index
    %c0_0 = arith.constant 0 : index
    %0 = vector.load %arg2[%c0, %c0_0] : memref<128x128xbf16, #tpu.memory_space<vmem>>, vector<128x128xbf16>
    %c0_1 = arith.constant 0 : index
    %c0_2 = arith.constant 0 : index
    %1 = vector.load %arg3[%c0_1, %c0_2] : memref<128x3xbf16, #tpu.memory_space<vmem>>, vector<128x3xbf16>
    %cst = arith.constant dense<0.000000e+00> : vector<128x3xf32>
    %2 = tpu.matmul %0, %1, %cst {dimension_numbers = #tpu.dot_dimension_numbers<[1], [0], [0], [1], [0, 0, 1, 1], [], []>} : vector<128x128xbf16>, vector<128x3xbf16>, vector<128x3xf32> -> vector<128x3xf32>
    %c0_3 = arith.constant 0 : index
    %c0_4 = arith.constant 0 : index
    %3 = vector.load %arg4[%c0_3, %c0_4] : memref<1x3xf32, #tpu.memory_space<vmem>>, vector<1x3xf32>
    %4 = vector.broadcast %3 : vector<1x3xf32> to vector<128x3xf32>
    %5 = arith.mulf %2, %4 : vector<128x3xf32>
    %c0_5 = arith.constant 0 : index
    %c0_6 = arith.constant 0 : index
    %6 = vector.load %arg5[%c0_5, %c0_6] : memref<1x3xf32, #tpu.memory_space<vmem>>, vector<1x3xf32>
    %7 = vector.broadcast %6 : vector<1x3xf32> to vector<128x3xf32>
    %8 = arith.addf %5, %7 : vector<128x3xf32>
    %9 = arith.truncf %8 : vector<128x3xf32> to vector<128x3xbf16>
    %c0_7 = arith.constant 0 : index
    %c0_8 = arith.constant 0 : index
    %10 = vector.load %arg6[%c0_7, %c0_8] : memref<128x3xbf16, #tpu.memory_space<vmem>>, vector<128x3xbf16>
    tpu.vector_store %arg6[%c0_7, %c0_8], %9 {strides = array<i32>} : memref<128x3xbf16, #tpu.memory_space<vmem>>, vector<128x3xbf16>,
    return
  }
  func.func @transform_0(%arg0: i32, %arg1: i32) -> (i32, i32) {
    %c0_i32 = arith.constant 0 : i32
    %c0_i32_0 = arith.constant 0 : i32
    return %arg0, %c0_i32 : i32, i32
  }
  func.func @transform_1(%arg0: i32, %arg1: i32) -> (i32, i32) {
    %c0_i32 = arith.constant 0 : i32
    %c0_i32_0 = arith.constant 0 : i32
    return %c0_i32, %arg1 : i32, i32
  }
  func.func @transform_2(%arg0: i32, %arg1: i32) -> (i32, i32) {
    %c0_i32 = arith.constant 0 : i32
    %c0_i32_0 = arith.constant 0 : i32
    return %c0_i32, %arg1 : i32, i32
  }
  func.func @transform_3(%arg0: i32, %arg1: i32) -> (i32, i32) {
    %c0_i32 = arith.constant 0 : i32
    %c0_i32_0 = arith.constant 0 : i32
    return %c0_i32, %arg1 : i32, i32
  }
  func.func @transform_4(%arg0: i32, %arg1: i32) -> (i32, i32) {
    %c0_i32 = arith.constant 0 : i32
    return %arg0, %arg1 : i32, i32
  }
}

</mosaic_0001>

<llo_original>
// kernel: fused_matmul.1
$region0: #{fused_matmul.1}
  #allocation0 [shape = 'u32[]', space=smem, size = 0x4, offset = 0x4, fixed_abs, tag = 'smem constant byte address 0x4 - core index']
  #allocation1 [shape = 'u32[72,128]{1,0:T(1,128)}', space=vmem, size = 0x9000, scoped, tag = 'internal scratch']
  %s0 = inlined_call_operand.vmem [shape: bf16[512,128], index: 0, kind: input, shape index: {}]
  %s1 = inlined_call_operand.vmem [shape: bf16[128,3], index: 1, kind: input, shape index: {}]
  %s2 = inlined_call_operand.vmem [shape: f32[1,3], index: 2, kind: input, shape index: {}]
  %s3 = inlined_call_operand.vmem [shape: f32[1,3], index: 3, kind: input, shape index: {}]
  %s4 = inlined_call_operand.vmem [shape: bf16[512,3], index: 4, kind: output, shape index: {}]
  %s5 = sld [smem:[#allocation0]]
  $region49: #{fused_matmul.1} parent=0
    _
  %s7 = ssub.s32 1, %s5
  %s8 = scalar_select 0, %s7, %s5
  loop: start=0, step=1, limit=6
  $region2: #{fused_matmul.1} parent=0 // loop_pre_header
    _
  $region3: #{fused_matmul.1} parent=0 // loop_header
    %s10 = sphi 0, %s14
    %p11 = scmp.ge.s32.totalorder %s10, 6
    %s17 = sphi 0, %s29
    %s18 = sphi 0, %s25
    %s19 = sphi 0, %s17
    %s20 = sphi 0, %s18
    %s21 = sphi 0, %s19
    %s22 = sphi 0, %s20
    %s32 = sphi 0, %s34
    %s35 = sphi 0, %s32
    %s36 = sphi 0, %s35
    %s52 = sphi 0, %s36
    %s58 = sphi 0, %s60
    %s61 = sphi 0, %s58
    %s62 = sphi 0, %s61
    %s78 = sphi 0, %s62
    %s84 = sphi 0, %s86
    %s87 = sphi 0, %s84
    %s88 = sphi 0, %s87
    %s104 = sphi 0, %s88
    %s110 = sphi 0, %s112
    %s113 = sphi 0, %s110
    %s114 = sphi 0, %s113
    %s130 = sphi 0, %s114
    %s138 = sphi 0, %s140
    %s141 = sphi 0, %s138
    %s142 = sphi 0, %s141
    %s158 = sphi 0, %s142
  $region4: #{fused_matmul.1} parent=0 // loop_header_branch
    %13 = sbr.rel (%p11) target = $region8
  $region5: #{fused_matmul.1} parent=0 // loop_body
    %s15 = ssub.s32 %s10, 1
    %s16 = ssub.s32 %s10, 2
    %s23 = sadd.s32 1, %s18
    %p24 = scmp.ge.s32.totalorder %s23, 1
    %s25 = scalar_select %p24, 0, %s23
    %s26 = sadd.s32 1, %s17
    %s27 = scalar_select %p24, %s26, %s17
    %p28 = scmp.ge.s32.totalorder %s27, 4
    %s29 = scalar_select %p28, 0, %s27
    %s30 = ssub.s32 %s17, %s29
    %p31 = scmp.eq.s32.totalorder %s30, 0
    %s33 = sadd.s32 %s32, 1
    %s34 = scalar_select %p31, %s32, %s33
    %p37 = pneg %p31
    %p38 = scmp.eq.s32.totalorder %s10, 3
    %p39 = por %p37, %p38
    %p40 = scmp.ne.s32.totalorder %s32, %s35
    %p41 = scmp.eq.s32.totalorder %s10, 0
    %p42 = por %p40, %p41
    %p43 = scmp.ne.s32.totalorder %s32, %s35
    %p44 = scmp.eq.s32.totalorder %s15, 3
    %p45 = por %p43, %p44
    %p46 = scmp.ne.s32.totalorder %s35, %s36
    %p47 = scmp.eq.s32.totalorder %s15, 0
    %p48 = por %p46, %p47
    %p49 = scmp.ne.s32.totalorder %s35, %s36
    %p50 = scmp.eq.s32.totalorder %s16, 3
    %p51 = por %p49, %p50
    %p53 = scmp.ne.s32.totalorder %s36, %s52
    %p54 = scmp.eq.s32.totalorder %s16, 0
    %p55 = por %p53, %p54
    %s56 = ssub.s32 %s18, %s25
    %p57 = scmp.eq.s32.totalorder %s56, 0
    %s59 = sadd.s32 %s58, 1
    %s60 = scalar_select %p57, %s58, %s59
    %p63 = pneg %p57
    %p64 = scmp.eq.s32.totalorder %s10, 3
    %p65 = por %p63, %p64
    %p66 = scmp.ne.s32.totalorder %s58, %s61
    %p67 = scmp.eq.s32.totalorder %s10, 0
    %p68 = por %p66, %p67
    %p69 = scmp.ne.s32.totalorder %s58, %s61
    %p70 = scmp.eq.s32.totalorder %s15, 3
    %p71 = por %p69, %p70
    %p72 = scmp.ne.s32.totalorder %s61, %s62
    %p73 = scmp.eq.s32.totalorder %s15, 0
    %p74 = por %p72, %p73
    %p75 = scmp.ne.s32.totalorder %s61, %s62
    %p76 = scmp.eq.s32.totalorder %s16, 3
    %p77 = por %p75, %p76
    %p79 = scmp.ne.s32.totalorder %s62, %s78
    %p80 = scmp.eq.s32.totalorder %s16, 0
    %p81 = por %p79, %p80
    %s82 = ssub.s32 %s18, %s25
    %p83 = scmp.eq.s32.totalorder %s82, 0
    %s85 = sadd.s32 %s84, 1
    %s86 = scalar_select %p83, %s84, %s85
    %p89 = pneg %p83
    %p90 = scmp.eq.s32.totalorder %s10, 3
    %p91 = por %p89, %p90
    %p92 = scmp.ne.s32.totalorder %s84, %s87
    %p93 = scmp.eq.s32.totalorder %s10, 0
    %p94 = por %p92, %p93
    %p95 = scmp.ne.s32.totalorder %s84, %s87
    %p96 = scmp.eq.s32.totalorder %s15, 3
    %p97 = por %p95, %p96
    %p98 = scmp.ne.s32.totalorder %s87, %s88
    %p99 = scmp.eq.s32.totalorder %s15, 0
    %p100 = por %p98, %p99
    %p101 = scmp.ne.s32.totalorder %s87, %s88
    %p102 = scmp.eq.s32.totalorder %s16, 3
    %p103 = por %p101, %p102
    %p105 = scmp.ne.s32.totalorder %s88, %s104
    %p106 = scmp.eq.s32.totalorder %s16, 0
    %p107 = por %p105, %p106
    %s108 = ssub.s32 %s18, %s25
    %p109 = scmp.eq.s32.totalorder %s108, 0
    %s111 = sadd.s32 %s110, 1
    %s112 = scalar_select %p109, %s110, %s111
    %p115 = pneg %p109
    %p116 = scmp.eq.s32.totalorder %s10, 3
    %p117 = por %p115, %p116
    %p118 = scmp.ne.s32.totalorder %s110, %s113
    %p119 = scmp.eq.s32.totalorder %s10, 0
    %p120 = por %p118, %p119
    %p121 = scmp.ne.s32.totalorder %s110, %s113
    %p122 = scmp.eq.s32.totalorder %s15, 3
    %p123 = por %p121, %p122
    %p124 = scmp.ne.s32.totalorder %s113, %s114
    %p125 = scmp.eq.s32.totalorder %s15, 0
    %p126 = por %p124, %p125
    %p127 = scmp.ne.s32.totalorder %s113, %s114
    %p128 = scmp.eq.s32.totalorder %s16, 3
    %p129 = por %p127, %p128
    %p131 = scmp.ne.s32.totalorder %s114, %s130
    %p132 = scmp.eq.s32.totalorder %s16, 0
    %p133 = por %p131, %p132
    %s134 = ssub.s32 %s17, %s29
    %s135 = ssub.s32 %s18, %s25
    %s136 = sor.u32 %s134, %s135
    %p137 = scmp.eq.s32.totalorder %s136, 0
    %s139 = sadd.s32 %s138, 1
    %s140 = scalar_select %p137, %s138, %s139
    %p143 = pneg %p137
    %p144 = scmp.eq.s32.totalorder %s10, 3
    %p145 = por %p143, %p144
    %p146 = scmp.ne.s32.totalorder %s138, %s141
    %p147 = scmp.eq.s32.totalorder %s10, 0
    %p148 = por %p146, %p147
    %p149 = scmp.ne.s32.totalorder %s138, %s141
    %p150 = scmp.eq.s32.totalorder %s15, 3
    %p151 = por %p149, %p150
    %p152 = scmp.ne.s32.totalorder %s141, %s142
    %p153 = scmp.eq.s32.totalorder %s15, 0
    %p154 = por %p152, %p153
    %p155 = scmp.ne.s32.totalorder %s141, %s142
    %p156 = scmp.eq.s32.totalorder %s16, 3
    %p157 = por %p155, %p156
    %p159 = scmp.ne.s32.totalorder %s142, %s158
    %p160 = scmp.eq.s32.totalorder %s16, 0
    %p161 = por %p159, %p160
    %p162 = scmp.le.s32.totalorder 1, %s10
    %p163 = scmp.lt.s32.totalorder %s10, 5
    %p164 = pnand %p162, %p163
    %p165 = pneg %p164
    // Predicated region
    $region9: #{fused_matmul.1} parent=5 // pred_check
      _
    $region10: #{fused_matmul.1} parent=5 // pred_check_branch
      %167 = sbr.rel (%p164) target = $region12
    $region11: #{fused_matmul.1} parent=5 // pred_region
      %s168 = ssub.s32 %s10, 1
      // Predicated region
      $region13: #{fused_matmul.1} parent=11 // pred_check
        %p169 = pneg %p74
      $region14: #{fused_matmul.1} parent=11 // pred_check_branch
        %171 = sbr.rel (%p169) target = $region16
      $region15: #{fused_matmul.1} parent=11 // pred_region
        %p172 = scmp.lt.s32.totalorder %s20, 0
        %s173 = scalar_select %p172, %s20, 0
        %s174 = smul.addr %s173, 4
        %s175 = scalar_lea.vmem %s1, %s174
      $region16: #{fused_matmul.1} parent=11 // pred_fallthru
        _
      // Predicated region
      $region17: #{fused_matmul.1} parent=11 // pred_check
        %p176 = pneg %p100
      $region18: #{fused_matmul.1} parent=11 // pred_check_branch
        %178 = sbr.rel (%p176) target = $region20
      $region19: #{fused_matmul.1} parent=11 // pred_region
        %p179 = scmp.lt.s32.totalorder %s20, 0
        %s180 = scalar_select %p179, %s20, 0
        %s181 = scalar_lea.vmem %s2, %s180
      $region20: #{fused_matmul.1} parent=11 // pred_fallthru
        _
      // Predicated region
      $region21: #{fused_matmul.1} parent=11 // pred_check
        %p182 = pneg %p126
      $region22: #{fused_matmul.1} parent=11 // pred_check_branch
        %184 = sbr.rel (%p182) target = $region24
      $region23: #{fused_matmul.1} parent=11 // pred_region
        %p185 = scmp.lt.s32.totalorder %s20, 0
        %s186 = scalar_select %p185, %s20, 0
        %s187 = scalar_lea.vmem %s3, %s186
      $region24: #{fused_matmul.1} parent=11 // pred_fallthru
        _
    $region12: #{fused_matmul.1} parent=5 // pred_fallthru
      _
    %p188 = scmp.lt.s32.totalorder %s10, 4
    // Predicated region
    $region25: #{fused_matmul.1} parent=5 // pred_check
      %p189 = pneg %p188
    $region26: #{fused_matmul.1} parent=5 // pred_check_branch
      %191 = sbr.rel (%p189) target = $region28
    $region27: #{fused_matmul.1} parent=5 // pred_region
      // Predicated region
      $region29: #{fused_matmul.1} parent=27 // pred_check
        %p192 = pneg %p42
      $region30: #{fused_matmul.1} parent=27 // pred_check_branch
        %194 = sbr.rel (%p192) target = $region32
      $region31: #{fused_matmul.1} parent=27 // pred_region
        %s195 = smul.u32 16, %s17
        %p196 = scmp.lt.s32.totalorder %s195, 63
        %s197 = scalar_select %p196, %s195, 63
        %s198 = smul.addr %s197, 4
        %s199 = scalar_lea.vmem %s0, %s198
        %s200 = smul.u32 16, %s17
      $region32: #{fused_matmul.1} parent=27 // pred_fallthru
        _
    $region28: #{fused_matmul.1} parent=5 // pred_fallthru
      _
    %p201 = scmp.le.s32.totalorder 1, %s10
    %p202 = scmp.lt.s32.totalorder %s10, 5
    %p203 = pnand %p201, %p202
    %p204 = pneg %p203
    // Predicated region
    $region33: #{fused_matmul.1} parent=5 // pred_check
      _
    $region34: #{fused_matmul.1} parent=5 // pred_check_branch
      %206 = sbr.rel (%p203) target = $region36
    $region35: #{fused_matmul.1} parent=5 // pred_region
      %s207 = ssub.s32 %s10, 1
      %s208 = smul.u32 16, %s19
      %p209 = scmp.lt.s32.totalorder %s208, 63
      %s210 = scalar_select %p209, %s208, 63
      %s211 = smul.addr %s210, 4
      %s212 = scalar_lea.vmem %s0, %s211
      %p213 = pneg %p48
      %p214 = pneg %p45
      %p215 = scmp.lt.s32.totalorder %s20, 0
      %s216 = scalar_select %p215, %s20, 0
      %s217 = smul.addr %s216, 4
      %s218 = scalar_lea.vmem %s1, %s217
      %p219 = pneg %p74
      %p220 = pneg %p71
      %p221 = scmp.lt.s32.totalorder %s20, 0
      %s222 = scalar_select %p221, %s20, 0
      %s223 = scalar_lea.vmem %s2, %s222
      %p224 = pneg %p100
      %p225 = pneg %p97
      %p226 = scmp.lt.s32.totalorder %s20, 0
      %s227 = scalar_select %p226, %s20, 0
      %s228 = scalar_lea.vmem %s3, %s227
      %p229 = pneg %p126
      %p230 = pneg %p123
      %p231 = pneg %p154
      %p232 = pneg %p151
      %s233 = smul.u32 16, %s19
      %p234 = scmp.lt.s32.totalorder %s233, 63
      %s235 = scalar_select %p234, %s233, 63
      %p236 = scmp.lt.s32.totalorder %s20, 0
      %s237 = scalar_select %p236, %s20, 0
      %s238 = sadd.s32 %s237, %s235
      %s239 = smul.addr %s238, 4
      %s240 = scalar_lea.vmem %s4, %s239
      %s241 = smul.u32 16, %s19
      %p242 = scmp.lt.s32.totalorder %s241, 63
      %s243 = scalar_select %p242, %s241, 63
      %s244 = smul.addr %s243, 4
      %s245 = scalar_lea.vmem %s0, %s244
      %s246 = smul.u32 16, %s19
      %p247 = scmp.lt.s32.totalorder %s20, 0
      %s248 = scalar_select %p247, %s20, 0
      %s249 = smul.addr %s248, 4
      %s250 = scalar_lea.vmem %s1, %s249
      %p251 = scmp.lt.s32.totalorder %s20, 0
      %s252 = scalar_select %p251, %s20, 0
      %s253 = scalar_lea.vmem %s2, %s252
      %p254 = scmp.lt.s32.totalorder %s20, 0
      %s255 = scalar_select %p254, %s20, 0
      %s256 = scalar_lea.vmem %s3, %s255
      %s257 = smul.u32 16, %s19
      %p258 = scmp.lt.s32.totalorder %s257, 63
      %s259 = scalar_select %p258, %s257, 63
      %p260 = scmp.lt.s32.totalorder %s20, 0
      %s261 = scalar_select %p260, %s20, 0
      %s262 = sadd.s32 %s261, %s259
      %s263 = smul.addr %s262, 4
      %s264 = scalar_lea.vmem %s4, %s263
      %s265 = smul.u32 16, %s19
      %v266 = vld [vmem:[%s245] sm:$0xf]
      %v267 = vld [vmem:[%s245 + $0x4] sm:$0xf]
      %v268 = vld [vmem:[%s245 + $0x8] sm:$0xf]
      %v269 = vld [vmem:[%s245 + $0xc] sm:$0xf]
      %v270 = vld [vmem:[%s245 + $0x10] sm:$0xf]
      %v271 = vld [vmem:[%s245 + $0x14] sm:$0xf]
      %v272 = vld [vmem:[%s245 + $0x18] sm:$0xf]
      %v273 = vld [vmem:[%s245 + $0x1c] sm:$0xf]
      %v274 = vld [vmem:[%s245 + $0x20] sm:$0xf]
      %v275 = vld [vmem:[%s245 + $0x24] sm:$0xf]
      %v276 = vld [vmem:[%s245 + $0x28] sm:$0xf]
      %v277 = vld [vmem:[%s245 + $0x2c] sm:$0xf]
      %v278 = vld [vmem:[%s245 + $0x30] sm:$0xf]
      %v279 = vld [vmem:[%s245 + $0x34] sm:$0xf]
      %v280 = vld [vmem:[%s245 + $0x38] sm:$0xf]
      %v281 = vld [vmem:[%s245 + $0x3c] sm:$0xf]
      %v282 = vld [vmem:[%s250] sm:$0xf]
      %v283 = vld [vmem:[%s250 + $0x4] sm:$0xf]
      %v284 = vld [vmem:[%s250 + $0x8] sm:$0xf]
      %v285 = vld [vmem:[%s250 + $0xc] sm:$0xf]
      %v286 = vld [vmem:[%s250 + $0x10] sm:$0xf]
      %v287 = vld [vmem:[%s250 + $0x14] sm:$0xf]
      %v288 = vld [vmem:[%s250 + $0x18] sm:$0xf]
      %v289 = vld [vmem:[%s250 + $0x1c] sm:$0xf]
      %v290 = vld [vmem:[%s250 + $0x20] sm:$0xf]
      %v291 = vld [vmem:[%s250 + $0x24] sm:$0xf]
      %v292 = vld [vmem:[%s250 + $0x28] sm:$0xf]
      %v293 = vld [vmem:[%s250 + $0x2c] sm:$0xf]
      %v294 = vld [vmem:[%s250 + $0x30] sm:$0xf]
      %v295 = vld [vmem:[%s250 + $0x34] sm:$0xf]
      %v296 = vld [vmem:[%s250 + $0x38] sm:$0xf]
      %v297 = vld [vmem:[%s250 + $0x3c] sm:$0xf]
      %v314 = vunpack.c.l.b16 %v266
      %v315 = vunpack.c.l.b16 %v267
      %v316 = vunpack.c.l.b16 %v268
      %v317 = vunpack.c.l.b16 %v269
      %v318 = vunpack.c.l.b16 %v270
      %v319 = vunpack.c.l.b16 %v271
      %v320 = vunpack.c.l.b16 %v272
      %v321 = vunpack.c.l.b16 %v273
      %v322 = vunpack.c.l.b16 %v274
      %v323 = vunpack.c.l.b16 %v275
      %v324 = vunpack.c.l.b16 %v276
      %v325 = vunpack.c.l.b16 %v277
      %v326 = vunpack.c.l.b16 %v278
      %v327 = vunpack.c.l.b16 %v279
      %v328 = vunpack.c.l.b16 %v280
      %v329 = vunpack.c.l.b16 %v281
      %v330 = vpack.c.b16 %v315, %v314
      %v331 = vpack.c.b16 %v317, %v316
      %v332 = vpack.c.b16 %v319, %v318
      %v333 = vpack.c.b16 %v321, %v320
      %v334 = vpack.c.b16 %v323, %v322
      %v335 = vpack.c.b16 %v325, %v324
      %v336 = vpack.c.b16 %v327, %v326
      %v337 = vpack.c.b16 %v329, %v328
      %v362 = vunpack.c.l.b16 %v282
      %v363 = vunpack.c.l.b16 %v283
      %v364 = vunpack.c.l.b16 %v284
      %v365 = vunpack.c.l.b16 %v285
      %v366 = vunpack.c.l.b16 %v286
      %v367 = vunpack.c.l.b16 %v287
      %v368 = vunpack.c.l.b16 %v288
      %v369 = vunpack.c.l.b16 %v289
      %v370 = vunpack.c.l.b16 %v290
      %v371 = vunpack.c.l.b16 %v291
      %v372 = vunpack.c.l.b16 %v292
      %v373 = vunpack.c.l.b16 %v293
      %v374 = vunpack.c.l.b16 %v294
      %v375 = vunpack.c.l.b16 %v295
      %v376 = vunpack.c.l.b16 %v296
      %v377 = vunpack.c.l.b16 %v297
      %v378 = vpack.c.b16 %v363, %v362
      %v379 = vpack.c.b16 %v365, %v364
      %v380 = vpack.c.b16 %v367, %v366
      %v381 = vpack.c.b16 %v369, %v368
      %v382 = vpack.c.b16 %v371, %v370
      %v383 = vpack.c.b16 %v373, %v372
      %v384 = vpack.c.b16 %v375, %v374
      %v385 = vpack.c.b16 %v377, %v376
      %394 = vmatpush.bf16.msra.mxu0 %v385
      %395 = vmatpush.bf16.msra.mxu0 %v384
      %396 = vmatpush.bf16.msra.mxu0 %v383
      %397 = vmatpush.bf16.msra.mxu0 %v382
      %398 = vmatpush.bf16.msra.mxu0 %v381
      %399 = vmatpush.bf16.msra.mxu0 %v380
      %400 = vmatpush.bf16.msra.mxu0 %v379
      %401 = vmatpush.bf16.msra.mxu0 %v378
      %402 = vmatmul.bf16.gmra.mxu0 %v330
      %v403 = vpop.f32.mrf.mxu0
      %v404 = vadd.f32 0.0, %v403
      %v405 = vpop.f32.mrf.mxu0
      %v406 = vadd.f32 0.0, %v405
      %407 = vmatmul.bf16.gmra.mxu0 %v331
      %v408 = vpop.f32.mrf.mxu0
      %v409 = vadd.f32 0.0, %v408
      %v410 = vpop.f32.mrf.mxu0
      %v411 = vadd.f32 0.0, %v410
      %412 = vmatmul.bf16.gmra.mxu0 %v332
      %v413 = vpop.f32.mrf.mxu0
      %v414 = vadd.f32 0.0, %v413
      %v415 = vpop.f32.mrf.mxu0
      %v416 = vadd.f32 0.0, %v415
      %417 = vmatmul.bf16.gmra.mxu0 %v333
      %v418 = vpop.f32.mrf.mxu0
      %v419 = vadd.f32 0.0, %v418
      %v420 = vpop.f32.mrf.mxu0
      %v421 = vadd.f32 0.0, %v420
      %422 = vmatmul.bf16.gmra.mxu0 %v334
      %v423 = vpop.f32.mrf.mxu0
      %v424 = vadd.f32 0.0, %v423
      %v425 = vpop.f32.mrf.mxu0
      %v426 = vadd.f32 0.0, %v425
      %427 = vmatmul.bf16.gmra.mxu0 %v335
      %v428 = vpop.f32.mrf.mxu0
      %v429 = vadd.f32 0.0, %v428
      %v430 = vpop.f32.mrf.mxu0
      %v431 = vadd.f32 0.0, %v430
      %432 = vmatmul.bf16.gmra.mxu0 %v336
      %v433 = vpop.f32.mrf.mxu0
      %v434 = vadd.f32 0.0, %v433
      %v435 = vpop.f32.mrf.mxu0
      %v436 = vadd.f32 0.0, %v435
      %437 = vmatmul.bf16.gmra.mxu0 %v337
      %v438 = vpop.f32.mrf.mxu0
      %v439 = vadd.f32 0.0, %v438
      %v440 = vpop.f32.mrf.mxu0
      %v441 = vadd.f32 0.0, %v440
      %442 = vdwg.mxu0
      %v443 = vld [vmem:[%s253] sm:$0x1]
      %v445 = vperm.slane %v443, 0
      %v447 = vmul.f32 %v404, %v445
      %v448 = vmul.f32 %v406, %v445
      %v449 = vmul.f32 %v409, %v445
      %v450 = vmul.f32 %v411, %v445
      %v451 = vmul.f32 %v414, %v445
      %v452 = vmul.f32 %v416, %v445
      %v453 = vmul.f32 %v419, %v445
      %v454 = vmul.f32 %v421, %v445
      %v455 = vmul.f32 %v424, %v445
      %v456 = vmul.f32 %v426, %v445
      %v457 = vmul.f32 %v429, %v445
      %v458 = vmul.f32 %v431, %v445
      %v459 = vmul.f32 %v434, %v445
      %v460 = vmul.f32 %v436, %v445
      %v461 = vmul.f32 %v439, %v445
      %v462 = vmul.f32 %v441, %v445
      %v463 = vld [vmem:[%s256] sm:$0x1]
      %v465 = vperm.slane %v463, 0
      %v467 = vadd.f32 %v447, %v465
      %v468 = vadd.f32 %v448, %v465
      %v469 = vadd.f32 %v449, %v465
      %v470 = vadd.f32 %v450, %v465
      %v471 = vadd.f32 %v451, %v465
      %v472 = vadd.f32 %v452, %v465
      %v473 = vadd.f32 %v453, %v465
      %v474 = vadd.f32 %v454, %v465
      %v475 = vadd.f32 %v455, %v465
      %v476 = vadd.f32 %v456, %v465
      %v477 = vadd.f32 %v457, %v465
      %v478 = vadd.f32 %v458, %v465
      %v479 = vadd.f32 %v459, %v465
      %v480 = vadd.f32 %v460, %v465
      %v481 = vadd.f32 %v461, %v465
      %v482 = vadd.f32 %v462, %v465
      %v483 = vpack.c.bf16 %v467, %v467
      %v484 = vpack.c.bf16 %v468, %v468
      %v485 = vpack.c.bf16 %v469, %v469
      %v486 = vpack.c.bf16 %v470, %v470
      %v487 = vpack.c.bf16 %v471, %v471
      %v488 = vpack.c.bf16 %v472, %v472
      %v489 = vpack.c.bf16 %v473, %v473
      %v490 = vpack.c.bf16 %v474, %v474
      %v491 = vpack.c.bf16 %v475, %v475
      %v492 = vpack.c.bf16 %v476, %v476
      %v493 = vpack.c.bf16 %v477, %v477
      %v494 = vpack.c.bf16 %v478, %v478
      %v495 = vpack.c.bf16 %v479, %v479
      %v496 = vpack.c.bf16 %v480, %v480
      %v497 = vpack.c.bf16 %v481, %v481
      %v498 = vpack.c.bf16 %v482, %v482
      %vm499 = vcmask 19456
      %500 = vst.msk [vmem:[%s264] sm:$0xf] %vm499, %v483
      %501 = vst.msk [vmem:[%s264 + $0x4] sm:$0xf] %vm499, %v484
      %502 = vst.msk [vmem:[%s264 + $0x8] sm:$0xf] %vm499, %v485
      %503 = vst.msk [vmem:[%s264 + $0xc] sm:$0xf] %vm499, %v486
      %504 = vst.msk [vmem:[%s264 + $0x10] sm:$0xf] %vm499, %v487
      %505 = vst.msk [vmem:[%s264 + $0x14] sm:$0xf] %vm499, %v488
      %506 = vst.msk [vmem:[%s264 + $0x18] sm:$0xf] %vm499, %v489
      %507 = vst.msk [vmem:[%s264 + $0x1c] sm:$0xf] %vm499, %v490
      %508 = vst.msk [vmem:[%s264 + $0x20] sm:$0xf] %vm499, %v491
      %509 = vst.msk [vmem:[%s264 + $0x24] sm:$0xf] %vm499, %v492
      %510 = vst.msk [vmem:[%s264 + $0x28] sm:$0xf] %vm499, %v493
      %511 = vst.msk [vmem:[%s264 + $0x2c] sm:$0xf] %vm499, %v494
      %512 = vst.msk [vmem:[%s264 + $0x30] sm:$0xf] %vm499, %v495
      %513 = vst.msk [vmem:[%s264 + $0x34] sm:$0xf] %vm499, %v496
      %514 = vst.msk [vmem:[%s264 + $0x38] sm:$0xf] %vm499, %v497
      %515 = vst.msk [vmem:[%s264 + $0x3c] sm:$0xf] %vm499, %v498
      %s516 = smul.u32 16, %s19
      %p517 = scmp.lt.s32.totalorder %s516, 63
      %s518 = scalar_select %p517, %s516, 63
      %p519 = scmp.lt.s32.totalorder %s20, 0
      %s520 = scalar_select %p519, %s20, 0
      %s521 = sadd.s32 %s520, %s518
      %s522 = smul.addr %s521, 4
      %s523 = scalar_lea.vmem %s4, %s522
      // Predicated region
      $region37: #{fused_matmul.1} parent=35 // pred_check
        %p524 = pneg %p151
      $region38: #{fused_matmul.1} parent=35 // pred_check_branch
        %526 = sbr.rel (%p524) target = $region40
      $region39: #{fused_matmul.1} parent=35 // pred_region
        %s527 = smul.u32 16, %s19
      $region40: #{fused_matmul.1} parent=35 // pred_fallthru
        _
    $region36: #{fused_matmul.1} parent=5 // pred_fallthru
      _
    %p528 = scmp.le.s32.totalorder 2, %s10
    // Predicated region
    $region41: #{fused_matmul.1} parent=5 // pred_check
      %p529 = pneg %p528
    $region42: #{fused_matmul.1} parent=5 // pred_check_branch
      %531 = sbr.rel (%p529) target = $region44
    $region43: #{fused_matmul.1} parent=5 // pred_region
      %s532 = ssub.s32 %s10, 2
      // Predicated region
      $region45: #{fused_matmul.1} parent=43 // pred_check
        %p533 = pneg %p157
      $region46: #{fused_matmul.1} parent=43 // pred_check_branch
        %535 = sbr.rel (%p533) target = $region48
      $region47: #{fused_matmul.1} parent=43 // pred_region
        %s536 = smul.u32 16, %s21
        %p537 = scmp.lt.s32.totalorder %s536, 63
        %s538 = scalar_select %p537, %s536, 63
        %p539 = scmp.lt.s32.totalorder %s22, 0
        %s540 = scalar_select %p539, %s22, 0
        %s541 = sadd.s32 %s540, %s538
        %s542 = smul.addr %s541, 4
        %s543 = scalar_lea.vmem %s4, %s542
      $region48: #{fused_matmul.1} parent=43 // pred_fallthru
        _
    $region44: #{fused_matmul.1} parent=5 // pred_fallthru
      _
  $region6: #{fused_matmul.1} parent=0 // loop_footer
    %s14 = sadd.s32 1, %s10
  $region7: #{fused_matmul.1} parent=0 // loop_footer_branch
    %9 = sbr.rel target = $region3
  $region8: #{fused_matmul.1} parent=0 // loop_exit
    _

</llo_original>
